<compile_context>
chip_gen: v6e
topology: v6e:2x2x1
jax: 0.10.0
libtpu: 0.0.40
codegen_flags: <defaults>
</compile_context>

<pallas_src>
import functools

import jax
import jax.numpy as jnp
from jax.experimental import pallas as pl
from jax.experimental.pallas import tpu as pltpu


def _focal_loss_kernel(logits_ref, targets_ref, out_ref, acc_ref, *,
                       alpha, gamma, n, tn, blocks_per_core):
    p = pl.program_id(0)          # core / partial-sum slot
    i = pl.program_id(1)          # row-tile index within this core's range

    @pl.when(i == 0)
    def _():
        acc_ref[...] = jnp.zeros_like(acc_ref)

    logits = logits_ref[...].astype(jnp.float32)             # (TN, C) f32
    tgt = targets_ref[...]                                    # (TN, 1) int32
    TN, C = logits.shape

    # logit of the target class: single select + reduce (no f32 one-hot).
    col = jax.lax.broadcasted_iota(jnp.int32, (1, C), 1)      # (1, C)
    tgt_logit = jnp.sum(jnp.where(col == tgt, logits, 0.0),
                        axis=-1, keepdims=True)                # (TN, 1)

    # numerically-stable log-sum-exp
    m = jnp.max(logits, axis=-1, keepdims=True)                # (TN, 1)
    e = jnp.exp(logits - m)                                     # (TN, C)
    s = jnp.sum(e, axis=-1, keepdims=True)                      # (TN, 1)

    # cross-entropy per example (>= 0 mathematically; clamp rounding)
    ce = jnp.maximum(jnp.log(s) + m - tgt_logit, 0.0)           # (TN, 1)

    # pt = softmax(logits)[target] == exp(-ce): TN-sized EUP exps, no extra
    # full-width multiply/reduction.
    pt = jnp.exp(-ce)
    one_minus_pt = jnp.maximum(1.0 - pt, 0.0)

    # focal weight (1 - pt)^gamma without a float-pow for integer gamma
    g = float(gamma)
    if g == int(g) and g >= 0:
        w = jnp.ones_like(one_minus_pt)
        for _ in range(int(g)):                                 # unrolled at trace time
            w = w * one_minus_pt
    else:
        w = jnp.power(jnp.maximum(one_minus_pt, 1e-30), g)

    focal = alpha * w * ce                                      # (TN, 1)

    # mask rows past N (remainder tiles and clamped duplicate tiles)
    blk = p * blocks_per_core + i
    row = jax.lax.broadcasted_iota(jnp.int32, (TN, 1), 0) + blk * tn
    focal = jnp.where(row < n, focal, 0.0)

    acc_ref[...] += jnp.sum(focal).reshape(1, 1)

    @pl.when(i == pl.num_programs(1) - 1)
    def _():
        # write this core's partial sum into element [0,0] of its (8,128) slab
        sub = jax.lax.broadcasted_iota(jnp.int32, out_ref.shape, 0)
        lane = jax.lax.broadcasted_iota(jnp.int32, out_ref.shape, 1)
        out_ref[...] = jnp.where((sub == 0) & (lane == 0), acc_ref[...], 0.0)


def _vmem_capacity_bytes():
    """Per-core VMEM capacity; conservative (v7x) fallback if query fails."""
    try:
        cap = int(pltpu.get_tpu_info().vmem_capacity_bytes)
        if cap > 0:
            return cap
    except Exception:
        pass
    return 64 * 1024 * 1024


def _pick_tile_rows(n, c, in_itemsize, vmem_budget_bytes):
    """Largest sublane-aligned row tile whose per-step footprint (2x double-
    buffered native input + ~4 f32 (TN,C) intermediates + lane-padded targets)
    fits the VMEM budget, capped at ~8 MiB of streamed input / 32768 rows."""
    align = 8 * max(1, 4 // max(1, in_itemsize))   # 8 f32 / 16 bf16 / 32 int8
    if n <= align:
        return n                                    # block == full dims, always legal
    bytes_per_row = c * (2 * in_itemsize + 4 * 4) + 2 * 128 * 4
    budget = max(1 << 20, vmem_budget_bytes - (8 << 20))
    tn = budget // bytes_per_row
    tn = min(tn, (8 << 20) // max(1, c * in_itemsize), 32768)
    if tn >= n:
        return n
    return max(align, (tn // align) * align)


def focal_loss(logits, targets, alpha=1.0, gamma=2.0, tile_rows=None):
    """Focal loss with scalar alpha, reduction='mean'.

    logits:  (N, C) float (any float dtype; streamed from HBM as-is)
    targets: (N,)   integer class indices
    returns: scalar float32
    """
    N, C = logits.shape
    in_itemsize = jnp.dtype(logits.dtype).itemsize
    targets2d = targets.astype(jnp.int32).reshape(N, 1)

    capacity = _vmem_capacity_bytes()
    vmem_limit = min(100 << 20, max(16 << 20, capacity - (8 << 20)))

    tn = tile_rows if tile_rows is not None else _pick_tile_rows(
        N, C, in_itemsize, vmem_limit)
    tn = min(int(tn), N)

    nblocks = pl.cdiv(N, tn)
    ncores = 2 if nblocks >= 2 else 1      # per-core partials; neutral on 1-TC chips
    bpc = pl.cdiv(nblocks, ncores)
    grid = (ncores, bpc)
    last_blk = nblocks - 1

    def in_map(p, i):
        # clamp so the DMA never targets a fully out-of-bounds block; the
        # in-kernel row mask zeroes any duplicated rows.
        return (jnp.minimum(p * bpc + i, last_blk), 0)

    kernel = functools.partial(_focal_loss_kernel, alpha=float(alpha),
                               gamma=float(gamma), n=N, tn=tn,
                               blocks_per_core=bpc)

    cost = pl.CostEstimate(
        flops=int(6 * N * C + 10 * N),
        transcendentals=int(N * C + 2 * N),
        bytes_accessed=int(N * C * in_itemsize + N * 4 + 8 * ncores * 128 * 4))

    partials = pl.pallas_call(
        kernel,
        out_shape=jax.ShapeDtypeStruct((8 * ncores, 128), jnp.float32),
        grid=grid,
        in_specs=[
            pl.BlockSpec((tn, C), in_map),
            pl.BlockSpec((tn, 1), in_map),
        ],
        out_specs=pl.BlockSpec((8, 128), lambda p, i: (p, 0)),
        scratch_shapes=[pltpu.VMEM((1, 1), jnp.float32)],
        compiler_params=pltpu.CompilerParams(
            dimension_semantics=("parallel", "arbitrary"),
            vmem_limit_bytes=int(vmem_limit)),
        cost_estimate=cost,
    )(logits, targets2d)

    # reduction='mean' (all non-[0,0] slab entries are zero)
    return jnp.sum(partials) / jnp.float32(N)


def _focal_loss_ref(logits, targets, alpha=1.0, gamma=2.0):
    """Pure-JAX reference (mirrors torch CE + focal weighting)."""
    logp = jax.nn.log_softmax(logits.astype(jnp.float32), axis=-1)
    ce = -jnp.take_along_axis(logp, targets[:, None].astype(jnp.int32),
                              axis=-1)[:, 0]
    pt = jnp.exp(-ce)
    return jnp.mean(alpha * (1.0 - pt) ** gamma * ce)


if __name__ == "__main__":
    key = jax.random.PRNGKey(0)
    k1, k2, k3, k4, k5, k6, k7, k8 = jax.random.split(key, 8)

    # 1) small batch of logits over 32 classes (single-block path)
    N, C = 8, 32
    logits = jax.random.normal(k1, (N, C), dtype=jnp.float32)
    targets = jax.random.randint(k2, (N,), 0, C, dtype=jnp.int32)
    loss = jax.block_until_ready(focal_loss(logits, targets, alpha=1.0, gamma=2.0))
    ref = _focal_loss_ref(logits, targets, alpha=1.0, gamma=2.0)
    assert jnp.allclose(loss, ref, rtol=1e-5, atol=1e-5), (loss, ref)

    # 2) N not a multiple of 8 (full-dim block path)
    N2, C2 = 20, 32
    logits2 = jax.random.normal(k3, (N2, C2), dtype=jnp.float32)
    targets2 = jax.random.randint(k4, (N2,), 0, C2, dtype=jnp.int32)
    loss2 = jax.block_until_ready(focal_loss(logits2, targets2))
    ref2 = _focal_loss_ref(logits2, targets2)
    assert jnp.allclose(loss2, ref2, rtol=1e-5, atol=1e-5), (loss2, ref2)

    # 3) multi-tile + two-partial path with a straddling remainder tile and a
    #    clamped (duplicated, masked) tile on the second partial
    N3, C3 = 37, 48
    logits3 = jax.random.normal(k5, (N3, C3), dtype=jnp.float32)
    targets3 = jax.random.randint(k6, (N3,), 0, C3, dtype=jnp.int32)
    loss3 = jax.block_until_ready(focal_loss(logits3, targets3, tile_rows=16))
    ref3 = _focal_loss_ref(logits3, targets3)
    assert jnp.allclose(loss3, ref3, rtol=1e-5, atol=1e-5), (loss3, ref3)

    # 4) bf16 logits streamed natively, 16-row (bf16-packed) tiles
    N4, C4 = 24, 32
    logits4 = jax.random.normal(k7, (N4, C4), dtype=jnp.float32).astype(jnp.bfloat16)
    targets4 = jax.random.randint(k8, (N4,), 0, C4, dtype=jnp.int32)
    loss4 = jax.block_until_ready(focal_loss(logits4, targets4, tile_rows=16))
    ref4 = _focal_loss_ref(logits4, targets4)
    assert jnp.allclose(loss4, ref4, rtol=1e-5, atol=1e-5), (loss4, ref4)

    print("KERNEL_OK")
</pallas_src>

<mosaic_0001>
module attributes {stable_mosaic.version = 11 : i64} {
  func.func @_focal_loss_kernel(%arg0: i32, %arg1: i32, %arg2: memref<8x32xf32, #tpu.memory_space<vmem>>, %arg3: memref<8x1xi32, #tpu.memory_space<vmem>>, %arg4: memref<8x128xf32, #tpu.memory_space<vmem>>, %arg5: memref<1x1xf32, #tpu.memory_space<vmem>>) attributes {dimension_semantics = [#tpu.dimension_semantics<parallel>, #tpu.dimension_semantics<arbitrary>], iteration_bounds = array<i64: 1, 1>, scalar_prefetch = 0 : i64, scratch_operands = 1 : i64, tpu.core_type = #tpu.core_type<tc>, window_params = [{transform_indices = @transform_0, window_bounds = array<i64: 8, 32>}, {transform_indices = @transform_1, window_bounds = array<i64: 8, 1>}, {transform_indices = @transform_2, window_bounds = array<i64: 8, 128>}]} {
    %c0_i32 = arith.constant 0 : i32
    %0 = arith.cmpi eq, %arg1, %c0_i32 : i32
    %1 = arith.extui %0 : i1 to i32
    %c0_i32_0 = arith.constant 0 : i32
    %2 = arith.cmpi ne, %1, %c0_i32_0 : i32
    scf.if %2 {
      %cst_22 = arith.constant 0.000000e+00 : f32
      %59 = vector.broadcast %cst_22 : f32 to vector<1x1xf32>
      %c0_23 = arith.constant 0 : index
      %c0_24 = arith.constant 0 : index
      %60 = vector.load %arg5[%c0_23, %c0_24] : memref<1x1xf32, #tpu.memory_space<vmem>>, vector<1x1xf32>
      tpu.vector_store %arg5[%c0_23, %c0_24], %59 {strides = array<i32>} : memref<1x1xf32, #tpu.memory_space<vmem>>, vector<1x1xf32>,
    } else {
    }
    %c0 = arith.constant 0 : index
    %c0_1 = arith.constant 0 : index
    %3 = vector.load %arg2[%c0, %c0_1] : memref<8x32xf32, #tpu.memory_space<vmem>>, vector<8x32xf32>
    %c0_2 = arith.constant 0 : index
    %c0_3 = arith.constant 0 : index
    %4 = vector.load %arg3[%c0_2, %c0_3] : memref<8x1xi32, #tpu.memory_space<vmem>>, vector<8x1xi32>
    %5 = tpu.iota {dimensions = array<i32: 1>} : vector<1x32xi32>
    %6 = vector.broadcast %5 : vector<1x32xi32> to vector<8x32xi32>
    %7 = vector.broadcast %4 : vector<8x1xi32> to vector<8x32xi32>
    %8 = arith.cmpi eq, %6, %7 : vector<8x32xi32>
    %cst = arith.constant 0.000000e+00 : f32
    %9 = vector.broadcast %cst : f32 to vector<8x32xf32>
    %10 = arith.select %8, %3, %9 : vector<8x32xi1>, vector<8x32xf32>
    %cst_4 = arith.constant dense<0.000000e+00> : vector<8xf32>
    %11 = vector.multi_reduction <add>, %10, %cst_4 [1] : vector<8x32xf32> to vector<8xf32>
    %12 = vector.shape_cast %11 : vector<8xf32> to vector<8x1xf32>
    %cst_5 = arith.constant dense<0xFF800000> : vector<8xf32>
    %13 = vector.multi_reduction <maximumf>, %3, %cst_5 [1] : vector<8x32xf32> to vector<8xf32>
    %14 = vector.shape_cast %13 : vector<8xf32> to vector<8x1xf32>
    %15 = vector.broadcast %14 : vector<8x1xf32> to vector<8x32xf32>
    %16 = arith.subf %3, %15 : vector<8x32xf32>
    %17 = math.exp %16 : vector<8x32xf32>
    %cst_6 = arith.constant dense<0.000000e+00> : vector<8xf32>
    %18 = vector.multi_reduction <add>, %17, %cst_6 [1] : vector<8x32xf32> to vector<8xf32>
    %19 = vector.shape_cast %18 : vector<8xf32> to vector<8x1xf32>
    %20 = math.log %19 : vector<8x1xf32>
    %21 = arith.addf %20, %14 : vector<8x1xf32>
    %22 = arith.subf %21, %12 : vector<8x1xf32>
    %cst_7 = arith.constant 0.000000e+00 : f32
    %23 = vector.broadcast %cst_7 : f32 to vector<8x1xf32>
    %24 = arith.maximumf %22, %23 : vector<8x1xf32>
    %cst_8 = arith.constant 0.000000e+00 : f32
    %25 = vector.broadcast %cst_8 : f32 to vector<8x1xf32>
    %26 = arith.subf %25, %24 : vector<8x1xf32>
    %27 = math.exp %26 : vector<8x1xf32>
    %cst_9 = arith.constant 1.000000e+00 : f32
    %28 = vector.broadcast %cst_9 : f32 to vector<8x1xf32>
    %29 = arith.subf %28, %27 : vector<8x1xf32>
    %cst_10 = arith.constant 0.000000e+00 : f32
    %30 = vector.broadcast %cst_10 : f32 to vector<8x1xf32>
    %31 = arith.maximumf %29, %30 : vector<8x1xf32>
    %cst_11 = arith.constant 1.000000e+00 : f32
    %32 = vector.broadcast %cst_11 : f32 to vector<8x1xf32>
    %33 = arith.mulf %32, %31 : vector<8x1xf32>
    %34 = arith.mulf %33, %31 : vector<8x1xf32>
    %cst_12 = arith.constant 1.000000e+00 : f32
    %35 = vector.broadcast %cst_12 : f32 to vector<8x1xf32>
    %36 = arith.mulf %35, %34 : vector<8x1xf32>
    %37 = arith.mulf %36, %24 : vector<8x1xf32>
    %c1_i32 = arith.constant 1 : i32
    %38 = arith.muli %arg0, %c1_i32 : i32
    %39 = arith.addi %38, %arg1 : i32
    %40 = tpu.iota {dimensions = array<i32: 0>} : vector<8x1xi32>
    %c8_i32 = arith.constant 8 : i32
    %41 = arith.muli %39, %c8_i32 : i32
    %42 = vector.broadcast %41 : i32 to vector<8x1xi32>
    %43 = arith.addi %40, %42 : vector<8x1xi32>
    %c8_i32_13 = arith.constant 8 : i32
    %44 = vector.broadcast %c8_i32_13 : i32 to vector<8x1xi32>
    %45 = arith.cmpi slt, %43, %44 : vector<8x1xi32>
    %cst_14 = arith.constant 0.000000e+00 : f32
    %46 = vector.broadcast %cst_14 : f32 to vector<8x1xf32>
    %47 = arith.select %45, %37, %46 : vector<8x1xi1>, vector<8x1xf32>
    %c0_15 = arith.constant 0 : index
    %c0_16 = arith.constant 0 : index
    %48 = vector.load %arg5[%c0_15, %c0_16] : memref<1x1xf32, #tpu.memory_space<vmem>>, vector<1x1xf32>
    %49 = vector.shape_cast %47 : vector<8x1xf32> to vector<1x8x1xf32>
    %cst_17 = arith.constant dense<0.000000e+00> : vector<1xf32>
    %50 = vector.multi_reduction <add>, %49, %cst_17 [1, 2] : vector<1x8x1xf32> to vector<1xf32>
    %51 = vector.shape_cast %50 : vector<1xf32> to vector<1x1x1xf32>
    %52 = vector.extract %51[0, 0, 0] : f32 from vector<1x1x1xf32>
    %53 = vector.broadcast %52 : f32 to vector<1x1xf32>
    %54 = arith.addf %48, %53 : vector<1x1xf32>
    %c0_18 = arith.constant 0 : index
    %c0_19 = arith.constant 0 : index
    %55 = vector.load %arg5[%c0_18, %c0_19] : memref<1x1xf32, #tpu.memory_space<vmem>>, vector<1x1xf32>
    tpu.vector_store %arg5[%c0_18, %c0_19], %54 {strides = array<i32>} : memref<1x1xf32, #tpu.memory_space<vmem>>, vector<1x1xf32>,
    %c0_i32_20 = arith.constant 0 : i32
    %56 = arith.cmpi eq, %arg1, %c0_i32_20 : i32
    %57 = arith.extui %56 : i1 to i32
    %c0_i32_21 = arith.constant 0 : i32
    %58 = arith.cmpi ne, %57, %c0_i32_21 : i32
    scf.if %58 {
      %59 = tpu.iota {dimensions = array<i32: 0>} : vector<8x128xi32>
      %60 = tpu.iota {dimensions = array<i32: 1>} : vector<8x128xi32>
      %c0_i32_22 = arith.constant 0 : i32
      %61 = vector.broadcast %c0_i32_22 : i32 to vector<8x128xi32>
      %62 = arith.cmpi eq, %59, %61 : vector<8x128xi32>
      %c0_i32_23 = arith.constant 0 : i32
      %63 = vector.broadcast %c0_i32_23 : i32 to vector<8x128xi32>
      %64 = arith.cmpi eq, %60, %63 : vector<8x128xi32>
      %65 = arith.andi %62, %64 : vector<8x128xi1>
      %c0_24 = arith.constant 0 : index
      %c0_25 = arith.constant 0 : index
      %66 = vector.load %arg5[%c0_24, %c0_25] : memref<1x1xf32, #tpu.memory_space<vmem>>, vector<1x1xf32>
      %cst_26 = arith.constant 0.000000e+00 : f32
      %67 = vector.shape_cast %66 : vector<1x1xf32> to vector<1x1xf32>
      %68 = vector.broadcast %67 : vector<1x1xf32> to vector<8x128xf32>
      %69 = vector.broadcast %cst_26 : f32 to vector<8x128xf32>
      %70 = arith.select %65, %68, %69 : vector<8x128xi1>, vector<8x128xf32>
      %c0_27 = arith.constant 0 : index
      %c0_28 = arith.constant 0 : index
      %71 = vector.load %arg4[%c0_27, %c0_28] : memref<8x128xf32, #tpu.memory_space<vmem>>, vector<8x128xf32>
      tpu.vector_store %arg4[%c0_27, %c0_28], %70 {strides = array<i32>} : memref<8x128xf32, #tpu.memory_space<vmem>>, vector<8x128xf32>,
    } else {
    }
    return
  }
  func.func @transform_0(%arg0: i32, %arg1: i32) -> (i32, i32) {
    %c1_i32 = arith.constant 1 : i32
    %0 = arith.muli %arg0, %c1_i32 : i32
    %1 = arith.addi %0, %arg1 : i32
    %c0_i32 = arith.constant 0 : i32
    %2 = arith.minsi %1, %c0_i32 : i32
    %c0_i32_0 = arith.constant 0 : i32
    %c0_i32_1 = arith.constant 0 : i32
    return %2, %c0_i32_0 : i32, i32
  }
  func.func @transform_1(%arg0: i32, %arg1: i32) -> (i32, i32) {
    %c1_i32 = arith.constant 1 : i32
    %0 = arith.muli %arg0, %c1_i32 : i32
    %1 = arith.addi %0, %arg1 : i32
    %c0_i32 = arith.constant 0 : i32
    %2 = arith.minsi %1, %c0_i32 : i32
    %c0_i32_0 = arith.constant 0 : i32
    %c0_i32_1 = arith.constant 0 : i32
    return %2, %c0_i32_0 : i32, i32
  }
  func.func @transform_2(%arg0: i32, %arg1: i32) -> (i32, i32) {
    %c0_i32 = arith.constant 0 : i32
    %c0_i32_0 = arith.constant 0 : i32
    return %arg0, %c0_i32 : i32, i32
  }
}

</mosaic_0001>

<llo_original>
// kernel: tpu_custom_call.1
$region0: #{tpu_custom_call.1}
  #allocation0 [shape = 'u32[]', space=smem, size = 0x4, offset = 0x4, fixed_abs, tag = 'smem constant byte address 0x4 - core index']
  #allocation1 [shape = 'u32[144,128]{1,0:T(1,128)}', space=vmem, size = 0x12000, scoped, tag = 'internal scratch']
  #allocation2 [shape = 'f32[1,1]{1,0:T(1,128)}', space=vmem, size = 0x200, scoped, tag = 'scratch operand']
  %s0 = inlined_call_operand.vmem [shape: f32[8,32], index: 0, kind: input, shape index: {}]
  %s1 = inlined_call_operand.vmem [shape: s32[8,1], index: 1, kind: input, shape index: {}]
  %s2 = inlined_call_operand.hbm [shape: f32[8,128], index: 2, kind: output, shape index: {}]
  %s3 = sld [smem:[#allocation0]]
  $region26: #{tpu_custom_call.1} parent=0
    _
  %s5 = ssub.s32 1, %s3
  %s6 = scalar_select 0, %s5, %s3
  $region1: #{tpu_custom_call.1} parent=0
    #allocation3 [shape = 'u8[4096]{0}', space=vmem, size = 0x1000, scoped, tag = 'output window, operand 0, single buffered']
    #allocation4 [shape = 's32[1]{0}', space=sflag, size = 0x4, scoped, tag = 'scoped memory for tpu_custom_call.1']
    %7 = vsyncpa [#allocation4], 0
    // Predicated region
    $region2: #{tpu_custom_call.1} parent=1 // pred_check
      _
    $region3: #{tpu_custom_call.1} parent=1 // pred_check_branch
      %9 = sbr.rel (0) target = $region5
    $region4: #{tpu_custom_call.1} parent=1 // pred_region
      %s10 = sadd.s32 0, 0
      %p11 = scmp.lt.s32.totalorder %s10, 0
      %s12 = scalar_select %p11, %s10, 0
      %p13 = scmp.lt.s32.totalorder %s12, 0
      %s14 = scalar_select %p13, %s12, 0
      %s15 = smul.addr %s14, 8
      %s16 = scalar_lea.vmem %s0, %s15
      %s17 = sadd.s32 0, 0
      %p18 = scmp.lt.s32.totalorder %s17, 0
      %s19 = scalar_select %p18, %s17, 0
    $region5: #{tpu_custom_call.1} parent=1 // pred_fallthru
      _
    // Predicated region
    $region6: #{tpu_custom_call.1} parent=1 // pred_check
      _
    $region7: #{tpu_custom_call.1} parent=1 // pred_check_branch
      %21 = sbr.rel (0) target = $region9
    $region8: #{tpu_custom_call.1} parent=1 // pred_region
      %s22 = sadd.s32 0, 0
      %p23 = scmp.lt.s32.totalorder %s22, 0
      %s24 = scalar_select %p23, %s22, 0
      %p25 = scmp.lt.s32.totalorder %s24, 0
      %s26 = scalar_select %p25, %s24, 0
      %s27 = smul.addr %s26, 8
      %s28 = scalar_lea.vmem %s1, %s27
      %s29 = sadd.s32 0, 0
      %p30 = scmp.lt.s32.totalorder %s29, 0
      %s31 = scalar_select %p30, %s29, 0
    $region9: #{tpu_custom_call.1} parent=1 // pred_fallthru
      _
    %s32 = sadd.s32 0, 0
    %p33 = scmp.lt.s32.totalorder %s32, 0
    %s34 = scalar_select %p33, %s32, 0
    %p35 = scmp.lt.s32.totalorder %s34, 0
    %s36 = scalar_select %p35, %s34, 0
    %s37 = smul.addr %s36, 8
    %s38 = scalar_lea.vmem %s0, %s37
    %s39 = sadd.s32 0, 0
    %p40 = scmp.lt.s32.totalorder %s39, 0
    %s41 = scalar_select %p40, %s39, 0
    %p42 = scmp.lt.s32.totalorder %s41, 0
    %s43 = scalar_select %p42, %s41, 0
    %s44 = smul.addr %s43, 8
    %s45 = scalar_lea.vmem %s1, %s44
    %s46 = sadd.s32 0, 0
    %p47 = scmp.lt.s32.totalorder %s46, 0
    %s48 = scalar_select %p47, %s46, 0
    %p49 = scmp.lt.s32.totalorder %s48, 0
    %s50 = scalar_select %p49, %s48, 0
    %s51 = smul.addr %s50, 8
    %s52 = scalar_lea.vmem %s0, %s51
    %s53 = sadd.s32 0, 0
    %p54 = scmp.lt.s32.totalorder %s53, 0
    %s55 = scalar_select %p54, %s53, 0
    %s56 = sadd.s32 0, 0
    %p57 = scmp.lt.s32.totalorder %s56, 0
    %s58 = scalar_select %p57, %s56, 0
    %p59 = scmp.lt.s32.totalorder %s58, 0
    %s60 = scalar_select %p59, %s58, 0
    %s61 = smul.addr %s60, 8
    %s62 = scalar_lea.vmem %s1, %s61
    %s63 = sadd.s32 0, 0
    %p64 = scmp.lt.s32.totalorder %s63, 0
    %s65 = scalar_select %p64, %s63, 0
    %p66 = scmp.eq.s32.totalorder 0, 0
    // Predicated region
    $region10: #{tpu_custom_call.1} parent=1 // pred_check
      %p67 = pneg %p66
    $region11: #{tpu_custom_call.1} parent=1 // pred_check_branch
      %69 = sbr.rel (%p67) target = $region13
    $region12: #{tpu_custom_call.1} parent=1 // pred_region
      %vm70 = vcmask 0
      %71 = vst.msk [vmem:[#allocation2] sm:$0x1] %vm70, 0.0
    $region13: #{tpu_custom_call.1} parent=1 // pred_fallthru
      _
    %v72 = vld [vmem:[%s52] sm:$0xff]
    %v73 = vld [vmem:[%s62] sm:$0xff]
    %v74 = vlaneseq
    %v75 = vand.u32 %v74, 127
    %76 = vset.pattern.permute.xlu0 0
    %77 = vperm.xlu0 %76, %v73
    %v78 = vpop.permute.xlu0 %77
    %vm79 = vcmp.eq.s32.totalorder %v75, %v78
    %v80 = vsel %vm79, %v72, 0.0
    %vm81 = vcmask 261120
    %v82 = vsel %vm81, %v80, 0.0
    %83 = vadd.xlane.f32.xlu0 %v82
    %v84 = vpop.xlane.xlu0 %83
    %v85 = vsel %vm81, %v72, -inf
    %86 = vmax.xlane.f32.xlu0 %v85
    %v87 = vpop.xlane.xlu0 %86
    %v88 = vsub.f32 %v72, %v87
    %v89 = vmul.f32 %v88, 1.442695
    %v90 = vpow.pop %v89
    %v91 = vsel %vm81, %v90, 0.0
    %92 = vadd.xlane.f32.xlu0 %v91
    %v93 = vpop.xlane.xlu0 %92
    %v94 = vlog2.pop %v93
    %v95 = vmul.f32 %v94, 0.6931472
    %v96 = vadd.f32 %v95, %v87
    %v97 = vsub.f32 %v96, %v84
    %v98 = vmax.f32 %v97, 0.0
    %v99 = vsub.f32 0.0, %v98
    %v100 = vmul.f32 %v99, 1.442695
    %v101 = vpow.pop %v100
    %v102 = vsub.f32 1.0, %v101
    %v103 = vmax.f32 %v102, 0.0
    %v104 = vmul.f32 %v103, %v103
    %v105 = vmul.f32 %v104, %v98
    %s106 = sadd.s32 0, 0
    %v107 = vlaneseq
    %v108 = vshrl.u32 %v107, 7
    %s109 = smul.u32 %s106, 8
    %v110 = vstv %s109
    %v111 = vadd.s32 %v108, %v110
    %vm112 = vcmp.lt.s32.totalorder %v111, 8
    %v113 = vsel %vm112, %v105, 0.0
    %v114 = vld [vmem:[#allocation2] sm:$0x1]
    %vm115 = vcmask 7168
    %v116 = vsel %vm115, %v113, 0.0
    %117 = vadd.xlane.f32.xlu0 %v116
    %v118 = vpop.xlane.xlu0 %117
    %v119 = vrot.slane %v118, 4
    %v120 = vadd.f32 %v118, %v119
    %v121 = vrot.slane %v120, 2
    %v122 = vadd.f32 %v120, %v121
    %v123 = vrot.slane %v122, 1
    %v124 = vadd.f32 %v122, %v123
    %s125 = vtos %v124
    %v126 = vstv %s125
    %v127 = vadd.f32 %v114, %v126
    %vm128 = vcmask 0
    %129 = vst.msk [vmem:[#allocation2] sm:$0x1] %vm128, %v127
    // Predicated region
    $region14: #{tpu_custom_call.1} parent=1 // pred_check
      %p130 = pneg %p66
    $region15: #{tpu_custom_call.1} parent=1 // pred_check_branch
      %132 = sbr.rel (%p130) target = $region17
    $region16: #{tpu_custom_call.1} parent=1 // pred_region
      %vm133 = vcmp.eq.s32.totalorder %v108, 0
      %vm134 = vcmp.eq.s32.totalorder %v75, 0
      %vm135 = vmand %vm133, %vm134
      %v136 = vld [vmem:[#allocation2] sm:$0x1]
      %v138 = vlaneseq
      %v139 = vshrl.u32 %v138, 7
      %v140 = vsub.s32 0, %v139
      %v141 = vrot.slane %v136, %v140
      %142 = vset.pattern.permute.xlu0 0
      %143 = vperm.xlu0 %142, %v141
      %v144 = vpop.permute.xlu0 %143
      %v146 = vsel %vm135, %v144, 0.0
      %147 = vst [vmem:[#allocation3] sm:$0xff] %v146
    $region17: #{tpu_custom_call.1} parent=1 // pred_fallthru
      _
    // Predicated region
    $region18: #{tpu_custom_call.1} parent=1 // pred_check
      _
    $region19: #{tpu_custom_call.1} parent=1 // pred_check_branch
      %149 = sbr.rel (0) target = $region21
    $region20: #{tpu_custom_call.1} parent=1 // pred_region
      %s151 = ssub.s32 128, 128
      %152 = vsyncadd [#allocation4], %s151
      %s154 = sshll.u32 [#allocation3], 4
      %s155 = int_to_ptr.vmem [resolvable:$true] %s154
      %157 = dma.vmem_to_hbm [thread:$0]  %s155, 128, %s2, [#allocation4]
    $region21: #{tpu_custom_call.1} parent=1 // pred_fallthru
      _
    // Predicated region
    $region22: #{tpu_custom_call.1} parent=1 // pred_check
      _
    $region23: #{tpu_custom_call.1} parent=1 // pred_check_branch
      %159 = sbr.rel (0) target = $region25
    $region24: #{tpu_custom_call.1} parent=1 // pred_region
      %160 = dma.done [#allocation4], 128
    $region25: #{tpu_custom_call.1} parent=1 // pred_fallthru
      _
    %161 = vsyncpa [#allocation4], 1

</llo_original>
